<compile_context>
chip_gen: v6e
topology: v6e:2x2x1
jax: 0.10.0
libtpu: 0.0.40
codegen_flags: <defaults>
</compile_context>

<pallas_src>
import functools

import jax
import jax.numpy as jnp
from jax import lax
from jax.experimental import pallas as pl
from jax.experimental.pallas import tpu as pltpu


def _round_up(a, m):
    return (a + m - 1) // m * m


def _pick_batch_block(n, per_image_bytes, *, target_block_bytes=2 << 20,
                      min_steps=2):
    """Largest divisor Nb of n with Nb*per_image <= target and >= min_steps steps."""
    best = 1
    for nb in range(1, n + 1):
        if n % nb:
            continue
        if nb > 1 and nb * per_image_bytes > target_block_bytes:
            break
        if n // nb >= min_steps or n < min_steps:
            best = nb
    return best


# ----------------------------------------------------------------------------
# Fused kernel: 1x1 grouped conv (+BN1 scale) -> zero-pad pool -> BN2 affine
# Operates on Nb images per grid step, flattened-spatial (lane-dense) layout.
# ----------------------------------------------------------------------------
def _fused_avgpool_bn_kernel(
    x_ref,      # (Nb, Cin, H*W)        VMEM  lane-dense flattened input
    w_ref,      # (Cout, Cin//groups)   VMEM  conv weight with BN1 scale folded
    s2_ref,     # (Cout, 1)             VMEM  scale2 / k^2
    b2_ref,     # (Cout, 1)             VMEM  shift1*scale2 + shift2
    o_ref,      # (Nb, Cout, Ho*Wo)     VMEM  lane-dense flattened output
    *, k, s, H, W, Ho, Wo, Cin, Cout, groups, Nb,
):
    f32 = jnp.float32
    ig = Cin // groups
    og = Cout // groups
    Lh = H + 3 - k                 # stride-1 row-window count over padded image
    LhW = Lh * W

    X = x_ref[...].astype(f32)                               # (Nb, Cin, HW)
    wv = w_ref[...].astype(f32)                              # (Cout, ig)

    # --- 1x1 grouped conv, vectorized across each group's output channels.
    # BN1 scale already folded into wv; BN1 shift folded into b2 (wrapper).
    grp = []
    for g in range(groups):
        wg = wv[g * og:(g + 1) * og, :]                      # (og, ig)
        acc = wg[:, 0:1][None] * X[:, g * ig:g * ig + 1, :]
        for ci in range(1, ig):
            acc = acc + wg[:, ci:ci + 1][None] * X[:, g * ig + ci:g * ig + ci + 1, :]
        grp.append(acc)                                      # (Nb, og, HW)
    Z = grp[0] if groups == 1 else jnp.concatenate(grp, axis=1)   # (Nb,Cout,HW)

    # --- H-direction pool of the zero-padded image, fully lane-dense:
    # prepend/append one zero row in the flattened layout, then k contiguous
    # lane slices + adds (rows stay contiguous under row-major flattening).
    zrow = jnp.zeros((Nb, Cout, W), f32)
    zrp = jnp.concatenate([zrow, Z, zrow], axis=-1)          # (Nb,Cout,(H+2)*W)
    hsum = zrp[:, :, 0:LhW]
    for di in range(1, k):
        hsum = hsum + zrp[:, :, di * W: di * W + LhW]        # (Nb, Cout, Lh*W)

    # --- W-direction pool (zero column padding) via masked lane shifts; the
    # per-lane column mask zeroes both the pad columns and cross-row bleed.
    pieces = [jnp.zeros((Nb, Cout, 1), f32), hsum]
    if k > 2:
        pieces.append(jnp.zeros((Nb, Cout, k - 2), f32))
    hext = jnp.concatenate(pieces, axis=-1)                  # (Nb,Cout,LhW+k-1)
    col = lax.broadcasted_iota(jnp.int32, (1, 1, LhW), 2) % W
    wsum = jnp.zeros((Nb, Cout, LhW), f32)
    for dj in range(k):
        m = dj - 1                                           # source col offset
        shifted = hext[:, :, 1 + m: 1 + m + LhW]
        if m == 0:
            wsum = wsum + shifted
        elif m < 0:
            wsum = wsum + jnp.where(col >= (-m), shifted, 0.0)
        else:
            wsum = wsum + jnp.where(col <= (W - 1 - m), shifted, 0.0)

    # --- Extraction onto the flattened output grid.
    if s == 1 and Wo == W:
        out_flat = wsum                                      # Ho*Wo == Lh*W
    else:
        # TODO(synk): strided path is correctness-first (per-row lane slices +
        # one lane concat, single dense store); rarely used (stride-1, k=3 is
        # the common configuration and takes the branch above).
        rows = []
        for i in range(Ho):
            row = wsum[:, :, i * s * W: i * s * W + W]       # (Nb, Cout, W)
            if s > 1:
                row = lax.slice(row, (0, 0, 0),
                                (Nb, Cout, (Wo - 1) * s + 1), (1, 1, s))
            else:
                row = row[:, :, 0:Wo]
            rows.append(row)                                 # (Nb, Cout, Wo)
        out_flat = jnp.concatenate(rows, axis=-1)            # (Nb,Cout,Ho*Wo)

    # --- BN2 epilogue vectorized across channels; ONE lane-dense store.
    s2 = s2_ref[...][None]                                   # (1, Cout, 1)
    b2 = b2_ref[...][None]                                   # (1, Cout, 1)
    o_ref[...] = (out_flat * s2 + b2).astype(o_ref.dtype)


# ----------------------------------------------------------------------------
# Wrapper: parameter folding + lane-dense layout plumbing (free reshapes only)
# ----------------------------------------------------------------------------
def avgpool_bn_forward(x_nchw, params, *, pool_k, pool_s, groups=1):
    assert pool_k >= 3, "TODO(synk): pool kernel < 3 not supported"

    w = params["w"].astype(jnp.float32)               # (Cout, Cin // groups)
    scale1 = params["scale1"].astype(jnp.float32)     # (Cout,)
    shift1 = params["shift1"].astype(jnp.float32)
    scale2 = params["scale2"].astype(jnp.float32)
    shift2 = params["shift2"].astype(jnp.float32)

    N, Cin, H, W = x_nchw.shape
    Cout = w.shape[0]
    Hp, Wp = H + 2, W + 2
    Ho = (Hp - pool_k) // pool_s + 1
    Wo = (Wp - pool_k) // pool_s + 1
    HW, HoWo = H * W, Ho * Wo

    # One-off folds (O(Cout) work):
    #   y = conv(x)*scale1 + shift1, pad value = shift1 (eval BN, no conv bias)
    #   pad(y) == zero_pad(conv(x)*scale1) + shift1
    #   out = poolsum(zero_pad(x @ w_eff)) * (scale2/k^2) + (shift1*scale2+shift2)
    w_eff = w * scale1[:, None]
    s2_eff = (scale2 / float(pool_k * pool_k)).reshape(Cout, 1)
    b2_eff = (shift1 * scale2 + shift2).reshape(Cout, 1)

    # Lane-dense layouts: flatten spatial dims (free row-major reshapes).
    x_flat = x_nchw.reshape(N, Cin, HW)
    out_dtype = x_nchw.dtype

    itemsize_in = jnp.dtype(x_nchw.dtype).itemsize
    itemsize_out = jnp.dtype(out_dtype).itemsize
    per_image_blk = (_round_up(Cin, 8) * _round_up(HW, 128) * itemsize_in
                     + _round_up(Cout, 8) * _round_up(HoWo, 128) * itemsize_out)
    Nb = _pick_batch_block(N, per_image_blk)
    grid = (N // Nb,)

    # VMEM budget from (8,128)-padded tile shapes (double-buffered blocks +
    # headroom for in-kernel f32 temporaries), generation-aware cap.
    step_bytes = 2 * Nb * per_image_blk
    temps_bytes = 6 * Nb * _round_up(Cout, 8) * _round_up((H + 2) * W, 128) * 4
    try:
        cap = int(pltpu.get_tpu_info().vmem_capacity_bytes) * 3 // 4
    except Exception:
        cap = 48 * 1024 * 1024            # safe on v7x (64 MiB) and below
    vmem_limit = int(min(cap, max(8 << 20, 2 * (step_bytes + temps_bytes))))

    flops = 2 * N * HW * Cout * (Cin // groups)                   # conv MACs
    flops += 2 * N * Cout * (pool_k - 1) * (Hp * W + Lh * W if (Lh := H + 3 - pool_k) else 0)
    flops += 2 * N * Cout * HoWo                                  # BN2 affine
    bytes_accessed = (x_flat.size * itemsize_in
                      + N * Cout * HoWo * itemsize_out
                      + (w_eff.size + 2 * Cout) * 4)

    kern = functools.partial(
        _fused_avgpool_bn_kernel,
        k=pool_k, s=pool_s, H=H, W=W, Ho=Ho, Wo=Wo,
        Cin=Cin, Cout=Cout, groups=groups, Nb=Nb)

    out_flat = pl.pallas_call(
        kern,
        out_shape=jax.ShapeDtypeStruct((N, Cout, HoWo), out_dtype),
        grid=grid,
        in_specs=[
            pl.BlockSpec((Nb, Cin, HW), lambda n: (n, 0, 0)),        # x (flat)
            pl.BlockSpec((Cout, Cin // groups), lambda n: (0, 0)),   # w_eff
            pl.BlockSpec((Cout, 1), lambda n: (0, 0)),               # scale2/k^2
            pl.BlockSpec((Cout, 1), lambda n: (0, 0)),               # folded shift
        ],
        out_specs=pl.BlockSpec((Nb, Cout, HoWo), lambda n: (n, 0, 0)),
        compiler_params=pltpu.CompilerParams(
            dimension_semantics=("parallel",),
            vmem_limit_bytes=vmem_limit),
        cost_estimate=pl.CostEstimate(
            flops=int(flops), transcendentals=0,
            bytes_accessed=int(bytes_accessed)),
    )(x_flat, w_eff, s2_eff, b2_eff)

    return out_flat.reshape(N, Cout, Ho, Wo)


# ----------------------------------------------------------------------------
# Deterministic parameter init (shapes from the module's __init__)
# ----------------------------------------------------------------------------
def init_params(key, in_chs, out_chs, groups=1, eps=1e-5):
    ks = jax.random.split(key, 9)
    # nn.Conv2d(in, out, 1, bias=False, groups=groups): weight
    # (out_chs, in_chs//groups, 1, 1) squeezed to 2D.
    w = jax.random.normal(ks[0], (out_chs, in_chs // groups), jnp.float32) * 0.1

    def bn_fold(kg, kb, km, kv):
        gamma = jax.random.normal(kg, (out_chs,), jnp.float32) * 0.1 + 1.0
        beta = jax.random.normal(kb, (out_chs,), jnp.float32) * 0.1
        mean = jax.random.normal(km, (out_chs,), jnp.float32) * 0.1
        var = jax.random.uniform(kv, (out_chs,), jnp.float32, minval=0.5, maxval=1.5)
        scale = gamma / jnp.sqrt(var + eps)
        shift = beta - mean * scale
        return scale, shift

    scale1, shift1 = bn_fold(ks[1], ks[2], ks[3], ks[4])   # BNAndPadLayer.bn
    scale2, shift2 = bn_fold(ks[5], ks[6], ks[7], ks[8])   # bn2
    return dict(w=w, scale1=scale1, shift1=shift1, scale2=scale2, shift2=shift2)


# ----------------------------------------------------------------------------
# Pure-JAX reference mirroring the PyTorch module (eval-mode BN)
# ----------------------------------------------------------------------------
def reference(x_nchw, params, pool_k, pool_s, groups=1):
    w = params["w"]
    scale1, shift1 = params["scale1"], params["shift1"]
    scale2, shift2 = params["scale2"], params["shift2"]
    N, Cin, H, W = x_nchw.shape
    Cout = w.shape[0]
    og, ig = Cout // groups, Cin // groups
    ys = []
    for g in range(groups):
        xg = x_nchw[:, g * ig:(g + 1) * ig]            # (N, ig, H, W)
        wg = w[g * og:(g + 1) * og]                    # (og, ig)
        ys.append(jnp.einsum("nihw,oi->nohw", xg, wg))
    y = jnp.concatenate(ys, axis=1)
    y = y * scale1[None, :, None, None] + shift1[None, :, None, None]
    # BNAndPadLayer(pad_pixels=1): border value = beta - mean*gamma/sqrt(var+eps)
    pad = jnp.broadcast_to(shift1[None, :, None, None], (N, Cout, H + 2, W + 2))
    yp = pad.at[:, :, 1:-1, 1:-1].set(y)
    pooled = lax.reduce_window(
        yp, 0.0, lax.add, (1, 1, pool_k, pool_k), (1, 1, pool_s, pool_s), "VALID"
    ) / float(pool_k * pool_k)
    return pooled * scale2[None, :, None, None] + shift2[None, :, None, None]


if __name__ == "__main__":
    key = jax.random.PRNGKey(0)

    # AvgPoolBN(in_chs=4, out_chs=4, kernel_size=3, stride=1):
    #  - base config, groups=1 and groups=2 (no block-diagonal weight),
    #  - a larger-batch config exercising Nb>1 images per grid step.
    configs = [
        dict(N=2, Cin=4, Cout=4, H=16, W=16, pool_k=3, pool_s=1, groups=1),
        dict(N=2, Cin=4, Cout=4, H=16, W=16, pool_k=3, pool_s=1, groups=2),
        dict(N=8, Cin=4, Cout=4, H=16, W=16, pool_k=3, pool_s=1, groups=1),
    ]
    for i, cfg in enumerate(configs):
        kxi, kpi = jax.random.split(jax.random.fold_in(key, i))
        x = jax.random.normal(
            kxi, (cfg["N"], cfg["Cin"], cfg["H"], cfg["W"]), jnp.float32)
        params = init_params(kpi, cfg["Cin"], cfg["Cout"], groups=cfg["groups"])

        out = avgpool_bn_forward(
            x, params, pool_k=cfg["pool_k"], pool_s=cfg["pool_s"],
            groups=cfg["groups"])
        out = jax.block_until_ready(out)

        ref = reference(x, params, cfg["pool_k"], cfg["pool_s"],
                        groups=cfg["groups"])
        assert out.shape == ref.shape, (out.shape, ref.shape)
        assert jnp.allclose(out, ref, atol=1e-4, rtol=1e-4), \
            f"mismatch vs reference (config {i})"

    print("KERNEL_OK")
</pallas_src>

<mosaic_0001>
module attributes {stable_mosaic.version = 11 : i64} {
  func.func @_fused_avgpool_bn_kernel(%arg0: i32, %arg1: memref<1x4x256xf32, #tpu.memory_space<vmem>>, %arg2: memref<4x4xf32, #tpu.memory_space<vmem>>, %arg3: memref<4x1xf32, #tpu.memory_space<vmem>>, %arg4: memref<4x1xf32, #tpu.memory_space<vmem>>, %arg5: memref<1x4x256xf32, #tpu.memory_space<vmem>>) attributes {dimension_semantics = [#tpu.dimension_semantics<parallel>], iteration_bounds = array<i64: 2>, scalar_prefetch = 0 : i64, scratch_operands = 0 : i64, tpu.core_type = #tpu.core_type<tc>, window_params = [{transform_indices = @transform_0, window_bounds = array<i64: 1, 4, 256>}, {pipeline_mode = #tpu.pipeline_mode<synchronous>, transform_indices = @transform_1, window_bounds = array<i64: 4, 4>}, {pipeline_mode = #tpu.pipeline_mode<synchronous>, transform_indices = @transform_2, window_bounds = array<i64: 4, 1>}, {pipeline_mode = #tpu.pipeline_mode<synchronous>, transform_indices = @transform_3, window_bounds = array<i64: 4, 1>}, {transform_indices = @transform_4, window_bounds = array<i64: 1, 4, 256>}]} {
    %c0 = arith.constant 0 : index
    %c0_0 = arith.constant 0 : index
    %c0_1 = arith.constant 0 : index
    %0 = vector.load %arg1[%c0, %c0_0, %c0_1] : memref<1x4x256xf32, #tpu.memory_space<vmem>>, vector<1x4x256xf32>
    %c0_2 = arith.constant 0 : index
    %c0_3 = arith.constant 0 : index
    %1 = vector.load %arg2[%c0_2, %c0_3] : memref<4x4xf32, #tpu.memory_space<vmem>>, vector<4x4xf32>
    %2 = vector.extract_strided_slice %1 {offsets = [0, 0], sizes = [4, 1], strides = [1, 1]} : vector<4x4xf32> to vector<4x1xf32>
    %3 = vector.shape_cast %2 : vector<4x1xf32> to vector<1x4x1xf32>
    %4 = vector.extract_strided_slice %0 {offsets = [0, 0, 0], sizes = [1, 1, 256], strides = [1, 1, 1]} : vector<1x4x256xf32> to vector<1x1x256xf32>
    %5 = vector.broadcast %3 : vector<1x4x1xf32> to vector<1x4x256xf32>
    %6 = vector.broadcast %4 : vector<1x1x256xf32> to vector<1x4x256xf32>
    %7 = arith.mulf %5, %6 : vector<1x4x256xf32>
    %8 = vector.extract_strided_slice %1 {offsets = [0, 1], sizes = [4, 1], strides = [1, 1]} : vector<4x4xf32> to vector<4x1xf32>
    %9 = vector.shape_cast %8 : vector<4x1xf32> to vector<1x4x1xf32>
    %10 = vector.extract_strided_slice %0 {offsets = [0, 1, 0], sizes = [1, 1, 256], strides = [1, 1, 1]} : vector<1x4x256xf32> to vector<1x1x256xf32>
    %11 = vector.broadcast %9 : vector<1x4x1xf32> to vector<1x4x256xf32>
    %12 = vector.broadcast %10 : vector<1x1x256xf32> to vector<1x4x256xf32>
    %13 = arith.mulf %11, %12 : vector<1x4x256xf32>
    %14 = arith.addf %7, %13 : vector<1x4x256xf32>
    %15 = vector.extract_strided_slice %1 {offsets = [0, 2], sizes = [4, 1], strides = [1, 1]} : vector<4x4xf32> to vector<4x1xf32>
    %16 = vector.shape_cast %15 : vector<4x1xf32> to vector<1x4x1xf32>
    %17 = vector.extract_strided_slice %0 {offsets = [0, 2, 0], sizes = [1, 1, 256], strides = [1, 1, 1]} : vector<1x4x256xf32> to vector<1x1x256xf32>
    %18 = vector.broadcast %16 : vector<1x4x1xf32> to vector<1x4x256xf32>
    %19 = vector.broadcast %17 : vector<1x1x256xf32> to vector<1x4x256xf32>
    %20 = arith.mulf %18, %19 : vector<1x4x256xf32>
    %21 = arith.addf %14, %20 : vector<1x4x256xf32>
    %22 = vector.extract_strided_slice %1 {offsets = [0, 3], sizes = [4, 1], strides = [1, 1]} : vector<4x4xf32> to vector<4x1xf32>
    %23 = vector.shape_cast %22 : vector<4x1xf32> to vector<1x4x1xf32>
    %24 = vector.extract_strided_slice %0 {offsets = [0, 3, 0], sizes = [1, 1, 256], strides = [1, 1, 1]} : vector<1x4x256xf32> to vector<1x1x256xf32>
    %25 = vector.broadcast %23 : vector<1x4x1xf32> to vector<1x4x256xf32>
    %26 = vector.broadcast %24 : vector<1x1x256xf32> to vector<1x4x256xf32>
    %27 = arith.mulf %25, %26 : vector<1x4x256xf32>
    %28 = arith.addf %21, %27 : vector<1x4x256xf32>
    %cst = arith.constant 0.000000e+00 : f32
    %29 = vector.broadcast %cst : f32 to vector<1x4x16xf32>
    %30 = tpu.concatenate %29, %28, %29 in 2 : vector<1x4x16xf32>, vector<1x4x256xf32>, vector<1x4x16xf32> -> vector<1x4x288xf32>
    %31 = vector.extract_strided_slice %30 {offsets = [0, 0, 0], sizes = [1, 4, 256], strides = [1, 1, 1]} : vector<1x4x288xf32> to vector<1x4x256xf32>
    %32 = vector.extract_strided_slice %30 {offsets = [0, 0, 16], sizes = [1, 4, 256], strides = [1, 1, 1]} : vector<1x4x288xf32> to vector<1x4x256xf32>
    %33 = arith.addf %31, %32 : vector<1x4x256xf32>
    %34 = vector.extract_strided_slice %30 {offsets = [0, 0, 32], sizes = [1, 4, 256], strides = [1, 1, 1]} : vector<1x4x288xf32> to vector<1x4x256xf32>
    %35 = arith.addf %33, %34 : vector<1x4x256xf32>
    %cst_4 = arith.constant 0.000000e+00 : f32
    %36 = vector.broadcast %cst_4 : f32 to vector<1x4x1xf32>
    %cst_5 = arith.constant 0.000000e+00 : f32
    %37 = vector.broadcast %cst_5 : f32 to vector<1x4x1xf32>
    %38 = tpu.concatenate %36, %35, %37 in 2 : vector<1x4x1xf32>, vector<1x4x256xf32>, vector<1x4x1xf32> -> vector<1x4x258xf32>
    %39 = tpu.iota {dimensions = array<i32: 2>} : vector<1x1x256xi32>
    %c16_i32 = arith.constant 16 : i32
    %c0_i32 = arith.constant 0 : i32
    %40 = arith.cmpi eq, %c16_i32, %c0_i32 : i32
    %c1_i32 = arith.constant 1 : i32
    %41 = arith.select %40, %c1_i32, %c16_i32 : i32
    %42 = vector.broadcast %41 : i32 to vector<1x1x256xi32>
    %43 = arith.remsi %39, %42 : vector<1x1x256xi32>
    %c0_i32_6 = arith.constant 0 : i32
    %44 = vector.broadcast %c0_i32_6 : i32 to vector<1x1x256xi32>
    %45 = arith.cmpi ne, %43, %44 : vector<1x1x256xi32>
    %c0_i32_7 = arith.constant 0 : i32
    %46 = vector.broadcast %c0_i32_7 : i32 to vector<1x1x256xi32>
    %47 = arith.cmpi slt, %43, %46 : vector<1x1x256xi32>
    %c0_i32_8 = arith.constant 0 : i32
    %48 = arith.cmpi slt, %41, %c0_i32_8 : i32
    %49 = vector.broadcast %48 : i1 to vector<1x1x256xi1>
    %50 = vector.broadcast %49 : vector<1x1x256xi1> to vector<1x1x256xi1>
    %51 = arith.xori %47, %50 : vector<1x1x256xi1>
    %52 = arith.andi %51, %45 : vector<1x1x256xi1>
    %53 = vector.broadcast %41 : i32 to vector<1x1x256xi32>
    %54 = arith.addi %43, %53 : vector<1x1x256xi32>
    %55 = arith.select %52, %54, %43 : vector<1x1x256xi1>, vector<1x1x256xi32>
    %cst_9 = arith.constant 0.000000e+00 : f32
    %56 = vector.broadcast %cst_9 : f32 to vector<1x4x256xf32>
    %57 = vector.extract_strided_slice %38 {offsets = [0, 0, 0], sizes = [1, 4, 256], strides = [1, 1, 1]} : vector<1x4x258xf32> to vector<1x4x256xf32>
    %c1_i32_10 = arith.constant 1 : i32
    %58 = vector.broadcast %c1_i32_10 : i32 to vector<1x1x256xi32>
    %59 = arith.cmpi sge, %55, %58 : vector<1x1x256xi32>
    %cst_11 = arith.constant 0.000000e+00 : f32
    %60 = vector.shape_cast %59 : vector<1x1x256xi1> to vector<1x1x256xi1>
    %61 = vector.broadcast %60 : vector<1x1x256xi1> to vector<1x4x256xi1>
    %62 = vector.broadcast %cst_11 : f32 to vector<1x4x256xf32>
    %63 = arith.select %61, %57, %62 : vector<1x4x256xi1>, vector<1x4x256xf32>
    %64 = arith.addf %56, %63 : vector<1x4x256xf32>
    %65 = vector.extract_strided_slice %38 {offsets = [0, 0, 1], sizes = [1, 4, 256], strides = [1, 1, 1]} : vector<1x4x258xf32> to vector<1x4x256xf32>
    %66 = arith.addf %64, %65 : vector<1x4x256xf32>
    %67 = vector.extract_strided_slice %38 {offsets = [0, 0, 2], sizes = [1, 4, 256], strides = [1, 1, 1]} : vector<1x4x258xf32> to vector<1x4x256xf32>
    %c14_i32 = arith.constant 14 : i32
    %68 = vector.broadcast %c14_i32 : i32 to vector<1x1x256xi32>
    %69 = arith.cmpi sle, %55, %68 : vector<1x1x256xi32>
    %cst_12 = arith.constant 0.000000e+00 : f32
    %70 = vector.shape_cast %69 : vector<1x1x256xi1> to vector<1x1x256xi1>
    %71 = vector.broadcast %70 : vector<1x1x256xi1> to vector<1x4x256xi1>
    %72 = vector.broadcast %cst_12 : f32 to vector<1x4x256xf32>
    %73 = arith.select %71, %67, %72 : vector<1x4x256xi1>, vector<1x4x256xf32>
    %74 = arith.addf %66, %73 : vector<1x4x256xf32>
    %c0_13 = arith.constant 0 : index
    %c0_14 = arith.constant 0 : index
    %75 = vector.load %arg3[%c0_13, %c0_14] : memref<4x1xf32, #tpu.memory_space<vmem>>, vector<4x1xf32>
    %76 = vector.shape_cast %75 : vector<4x1xf32> to vector<1x4x1xf32>
    %c0_15 = arith.constant 0 : index
    %c0_16 = arith.constant 0 : index
    %77 = vector.load %arg4[%c0_15, %c0_16] : memref<4x1xf32, #tpu.memory_space<vmem>>, vector<4x1xf32>
    %78 = vector.shape_cast %77 : vector<4x1xf32> to vector<1x4x1xf32>
    %79 = vector.broadcast %76 : vector<1x4x1xf32> to vector<1x4x256xf32>
    %80 = arith.mulf %74, %79 : vector<1x4x256xf32>
    %81 = vector.broadcast %78 : vector<1x4x1xf32> to vector<1x4x256xf32>
    %82 = arith.addf %80, %81 : vector<1x4x256xf32>
    %c0_17 = arith.constant 0 : index
    %c0_18 = arith.constant 0 : index
    %c0_19 = arith.constant 0 : index
    %83 = vector.load %arg5[%c0_17, %c0_18, %c0_19] : memref<1x4x256xf32, #tpu.memory_space<vmem>>, vector<1x4x256xf32>
    tpu.vector_store %arg5[%c0_17, %c0_18, %c0_19], %82 {strides = array<i32>} : memref<1x4x256xf32, #tpu.memory_space<vmem>>, vector<1x4x256xf32>,
    return
  }
  func.func @transform_0(%arg0: i32) -> (i32, i32, i32) {
    %c0_i32 = arith.constant 0 : i32
    %c0_i32_0 = arith.constant 0 : i32
    %c0_i32_1 = arith.constant 0 : i32
    return %arg0, %c0_i32, %c0_i32_0 : i32, i32, i32
  }
  func.func @transform_1(%arg0: i32) -> (i32, i32) {
    %c0_i32 = arith.constant 0 : i32
    %c0_i32_0 = arith.constant 0 : i32
    %c0_i32_1 = arith.constant 0 : i32
    return %c0_i32, %c0_i32_0 : i32, i32
  }
  func.func @transform_2(%arg0: i32) -> (i32, i32) {
    %c0_i32 = arith.constant 0 : i32
    %c0_i32_0 = arith.constant 0 : i32
    %c0_i32_1 = arith.constant 0 : i32
    return %c0_i32, %c0_i32_0 : i32, i32
  }
  func.func @transform_3(%arg0: i32) -> (i32, i32) {
    %c0_i32 = arith.constant 0 : i32
    %c0_i32_0 = arith.constant 0 : i32
    %c0_i32_1 = arith.constant 0 : i32
    return %c0_i32, %c0_i32_0 : i32, i32
  }
  func.func @transform_4(%arg0: i32) -> (i32, i32, i32) {
    %c0_i32 = arith.constant 0 : i32
    %c0_i32_0 = arith.constant 0 : i32
    %c0_i32_1 = arith.constant 0 : i32
    return %arg0, %c0_i32, %c0_i32_0 : i32, i32, i32
  }
}

</mosaic_0001>

<llo_original>
// kernel: tpu_custom_call.1
$region0: #{tpu_custom_call.1}
  #allocation0 [shape = 'u32[]', space=smem, size = 0x4, offset = 0x4, fixed_abs, tag = 'smem constant byte address 0x4 - core index']
  #allocation1 [shape = 'u32[144,128]{1,0:T(1,128)}', space=vmem, size = 0x12000, scoped, tag = 'internal scratch']
  %s0 = inlined_call_operand.hbm [shape: f32[2,4,256], index: 0, kind: input, shape index: {}]
  %s1 = inlined_call_operand.vmem [shape: f32[4,4], index: 1, kind: input, shape index: {}]
  %s2 = inlined_call_operand.vmem [shape: f32[4,1], index: 2, kind: input, shape index: {}]
  %s3 = inlined_call_operand.vmem [shape: f32[4,1], index: 3, kind: input, shape index: {}]
  %s4 = inlined_call_operand.hbm [shape: f32[2,4,256], index: 4, kind: output, shape index: {}]
  %s5 = sld [smem:[#allocation0]]
  $region53: #{tpu_custom_call.1} parent=0
    _
  %s7 = ssub.s32 1, %s5
  %s8 = scalar_select 0, %s7, %s5
  $region1: #{tpu_custom_call.1} parent=0
    #allocation2 [shape = 'u8[8192]{0}', space=vmem, size = 0x2000, scoped, tag = 'input window, operand 0']
    #allocation3 [shape = 's32[2]{0}', space=sflag, size = 0x8, scoped, tag = 'scoped memory for tpu_custom_call.1']
    #allocation4 [shape = 's32[2]{0}', space=sflag, size = 0x8, scoped, tag = 'scoped memory for tpu_custom_call.1']
    #allocation5 [shape = 'u8[8192]{0}', space=vmem, size = 0x2000, scoped, tag = 'output window, operand 0']
    %9 = vsyncpa [#allocation3], 0
    %s10 = scalar_lea.sflag [#allocation3], 1
    %11 = vsyncpa %s10, 0
    %12 = vsyncpa [#allocation4], 0
    %s13 = scalar_lea.sflag [#allocation4], 1
    %14 = vsyncpa %s13, 0
    loop: start=0, step=1, limit=4
    $region2: #{tpu_custom_call.1} parent=1 // loop_pre_header
      _
    $region3: #{tpu_custom_call.1} parent=1 // loop_header
      %s16 = sphi 0, %s20
      %p17 = scmp.ge.s32.totalorder %s16, 4
      %s26 = sphi 0, %s28
      %s29 = sphi 0, %s26
      %s30 = sphi 0, %s29
      %s46 = sphi 0, %s30
      %s50 = sphi 0, %s50
      %s52 = sphi 0, %s50
      %s53 = sphi 0, %s52
      %s67 = sphi 0, %s53
      %s71 = sphi 0, %s71
      %s73 = sphi 0, %s71
      %s74 = sphi 0, %s73
      %s88 = sphi 0, %s74
      %s92 = sphi 0, %s92
      %s94 = sphi 0, %s92
      %s95 = sphi 0, %s94
      %s109 = sphi 0, %s95
      %s115 = sphi 0, %s117
      %s118 = sphi 0, %s115
      %s119 = sphi 0, %s118
      %s135 = sphi 0, %s119
    $region4: #{tpu_custom_call.1} parent=1 // loop_header_branch
      %19 = sbr.rel (%p17) target = $region8
    $region5: #{tpu_custom_call.1} parent=1 // loop_body
      %s21 = ssub.s32 %s16, 1
      %s22 = ssub.s32 %s16, 2
      %s23 = sadd.s32 %s16, 1
      %s24 = ssub.s32 %s16, %s23
      %p25 = scmp.eq.s32.totalorder %s24, 0
      %s27 = sadd.s32 %s26, 1
      %s28 = scalar_select %p25, %s26, %s27
      %p31 = pneg %p25
      %p32 = scmp.eq.s32.totalorder %s16, 1
      %p33 = por %p31, %p32
      %p34 = scmp.ne.s32.totalorder %s26, %s29
      %p35 = scmp.eq.s32.totalorder %s16, 0
      %p36 = por %p34, %p35
      %p37 = scmp.ne.s32.totalorder %s26, %s29
      %p38 = scmp.eq.s32.totalorder %s21, 1
      %p39 = por %p37, %p38
      %p40 = scmp.ne.s32.totalorder %s29, %s30
      %p41 = scmp.eq.s32.totalorder %s21, 0
      %p42 = por %p40, %p41
      %p43 = scmp.ne.s32.totalorder %s29, %s30
      %p44 = scmp.eq.s32.totalorder %s22, 1
      %p45 = por %p43, %p44
      %p47 = scmp.ne.s32.totalorder %s30, %s46
      %p48 = scmp.eq.s32.totalorder %s22, 0
      %p49 = por %p47, %p48
      %s51 = sadd.s32 %s50, 1
      %p54 = scmp.eq.s32.totalorder %s16, 1
      %p55 = scmp.ne.s32.totalorder %s50, %s52
      %p56 = scmp.eq.s32.totalorder %s16, 0
      %p57 = por %p55, %p56
      %p58 = scmp.ne.s32.totalorder %s50, %s52
      %p59 = scmp.eq.s32.totalorder %s21, 1
      %p60 = por %p58, %p59
      %p61 = scmp.ne.s32.totalorder %s52, %s53
      %p62 = scmp.eq.s32.totalorder %s21, 0
      %p63 = por %p61, %p62
      %p64 = scmp.ne.s32.totalorder %s52, %s53
      %p65 = scmp.eq.s32.totalorder %s22, 1
      %p66 = por %p64, %p65
      %p68 = scmp.ne.s32.totalorder %s53, %s67
      %p69 = scmp.eq.s32.totalorder %s22, 0
      %p70 = por %p68, %p69
      %s72 = sadd.s32 %s71, 1
      %p75 = scmp.eq.s32.totalorder %s16, 1
      %p76 = scmp.ne.s32.totalorder %s71, %s73
      %p77 = scmp.eq.s32.totalorder %s16, 0
      %p78 = por %p76, %p77
      %p79 = scmp.ne.s32.totalorder %s71, %s73
      %p80 = scmp.eq.s32.totalorder %s21, 1
      %p81 = por %p79, %p80
      %p82 = scmp.ne.s32.totalorder %s73, %s74
      %p83 = scmp.eq.s32.totalorder %s21, 0
      %p84 = por %p82, %p83
      %p85 = scmp.ne.s32.totalorder %s73, %s74
      %p86 = scmp.eq.s32.totalorder %s22, 1
      %p87 = por %p85, %p86
      %p89 = scmp.ne.s32.totalorder %s74, %s88
      %p90 = scmp.eq.s32.totalorder %s22, 0
      %p91 = por %p89, %p90
      %s93 = sadd.s32 %s92, 1
      %p96 = scmp.eq.s32.totalorder %s16, 1
      %p97 = scmp.ne.s32.totalorder %s92, %s94
      %p98 = scmp.eq.s32.totalorder %s16, 0
      %p99 = por %p97, %p98
      %p100 = scmp.ne.s32.totalorder %s92, %s94
      %p101 = scmp.eq.s32.totalorder %s21, 1
      %p102 = por %p100, %p101
      %p103 = scmp.ne.s32.totalorder %s94, %s95
      %p104 = scmp.eq.s32.totalorder %s21, 0
      %p105 = por %p103, %p104
      %p106 = scmp.ne.s32.totalorder %s94, %s95
      %p107 = scmp.eq.s32.totalorder %s22, 1
      %p108 = por %p106, %p107
      %p110 = scmp.ne.s32.totalorder %s95, %s109
      %p111 = scmp.eq.s32.totalorder %s22, 0
      %p112 = por %p110, %p111
      %s113 = ssub.s32 %s16, %s23
      %p114 = scmp.eq.s32.totalorder %s113, 0
      %s116 = sadd.s32 %s115, 1
      %s117 = scalar_select %p114, %s115, %s116
      %p120 = pneg %p114
      %p121 = scmp.eq.s32.totalorder %s16, 1
      %p122 = por %p120, %p121
      %p123 = scmp.ne.s32.totalorder %s115, %s118
      %p124 = scmp.eq.s32.totalorder %s16, 0
      %p125 = por %p123, %p124
      %p126 = scmp.ne.s32.totalorder %s115, %s118
      %p127 = scmp.eq.s32.totalorder %s21, 1
      %p128 = por %p126, %p127
      %p129 = scmp.ne.s32.totalorder %s118, %s119
      %p130 = scmp.eq.s32.totalorder %s21, 0
      %p131 = por %p129, %p130
      %p132 = scmp.ne.s32.totalorder %s118, %s119
      %p133 = scmp.eq.s32.totalorder %s22, 1
      %p134 = por %p132, %p133
      %p136 = scmp.ne.s32.totalorder %s119, %s135
      %p137 = scmp.eq.s32.totalorder %s22, 0
      %p138 = por %p136, %p137
      %p139 = scmp.le.s32.totalorder 1, %s16
      %p140 = scmp.lt.s32.totalorder %s16, 3
      %p141 = pnand %p139, %p140
      %p142 = pneg %p141
      // Predicated region
      $region9: #{tpu_custom_call.1} parent=5 // pred_check
        _
      $region10: #{tpu_custom_call.1} parent=5 // pred_check_branch
        %144 = sbr.rel (%p141) target = $region12
      $region11: #{tpu_custom_call.1} parent=5 // pred_region
        %s145 = ssub.s32 %s16, 1
        // Predicated region
        $region13: #{tpu_custom_call.1} parent=11 // pred_check
          %p146 = pneg %p63
        $region14: #{tpu_custom_call.1} parent=11 // pred_check_branch
          %148 = sbr.rel (%p146) target = $region16
        $region15: #{tpu_custom_call.1} parent=11 // pred_region
          _
        $region16: #{tpu_custom_call.1} parent=11 // pred_fallthru
          _
        // Predicated region
        $region17: #{tpu_custom_call.1} parent=11 // pred_check
          %p149 = pneg %p84
        $region18: #{tpu_custom_call.1} parent=11 // pred_check_branch
          %151 = sbr.rel (%p149) target = $region20
        $region19: #{tpu_custom_call.1} parent=11 // pred_region
          _
        $region20: #{tpu_custom_call.1} parent=11 // pred_fallthru
          _
        // Predicated region
        $region21: #{tpu_custom_call.1} parent=11 // pred_check
          %p152 = pneg %p105
        $region22: #{tpu_custom_call.1} parent=11 // pred_check_branch
          %154 = sbr.rel (%p152) target = $region24
        $region23: #{tpu_custom_call.1} parent=11 // pred_region
          _
        $region24: #{tpu_custom_call.1} parent=11 // pred_fallthru
          _
      $region12: #{tpu_custom_call.1} parent=5 // pred_fallthru
        _
      %p155 = scmp.lt.s32.totalorder %s16, 2
      // Predicated region
      $region25: #{tpu_custom_call.1} parent=5 // pred_check
        %p156 = pneg %p155
      $region26: #{tpu_custom_call.1} parent=5 // pred_check_branch
        %158 = sbr.rel (%p156) target = $region28
      $region27: #{tpu_custom_call.1} parent=5 // pred_region
        // Predicated region
        $region29: #{tpu_custom_call.1} parent=27 // pred_check
          %p159 = pneg %p36
        $region30: #{tpu_custom_call.1} parent=27 // pred_check_branch
          %161 = sbr.rel (%p159) target = $region32
        $region31: #{tpu_custom_call.1} parent=27 // pred_region
          %s162 = sand.u32 %s26, 1
          %s163 = scalar_lea.sflag [#allocation3], %s162
          %s164 = sand.u32 %s26, 1
          %s165 = smul.addr %s164, 8
          %s166 = scalar_lea.vmem [#allocation2], %s165
          %s168 = ssub.s32 128, 128
          %169 = vsyncadd %s163, %s168
          %s170 = smul.addr %s16, 2
          %s171 = smul.addr %s170, 64
          %s172 = scalar_lea.hbm %s0, %s171
          %s174 = sshll.u32 %s166, 4
          %s175 = int_to_ptr.vmem [resolvable:$true] %s174
          %177 = dma.hbm_to_vmem [thread:$0]  %s172, 128, %s175, %s163
        $region32: #{tpu_custom_call.1} parent=27 // pred_fallthru
          _
      $region28: #{tpu_custom_call.1} parent=5 // pred_fallthru
        _
      %p178 = scmp.le.s32.totalorder 1, %s16
      %p179 = scmp.lt.s32.totalorder %s16, 3
      %p180 = pnand %p178, %p179
      %p181 = pneg %p180
      // Predicated region
      $region33: #{tpu_custom_call.1} parent=5 // pred_check
        _
      $region34: #{tpu_custom_call.1} parent=5 // pred_check_branch
        %183 = sbr.rel (%p180) target = $region36
      $region35: #{tpu_custom_call.1} parent=5 // pred_region
        %s184 = ssub.s32 %s16, 1
        %s185 = sand.u32 %s29, 1
        %s186 = scalar_lea.sflag [#allocation3], %s185
        %s187 = sand.u32 %s29, 1
        %s188 = smul.addr %s187, 8
        %s189 = scalar_lea.vmem [#allocation2], %s188
        // Predicated region
        $region37: #{tpu_custom_call.1} parent=35 // pred_check
          %p190 = pneg %p42
        $region38: #{tpu_custom_call.1} parent=35 // pred_check_branch
          %192 = sbr.rel (%p190) target = $region40
        $region39: #{tpu_custom_call.1} parent=35 // pred_region
          %193 = dma.done %s186, 128
        $region40: #{tpu_custom_call.1} parent=35 // pred_fallthru
          _
        %s194 = sand.u32 %s29, 1
        %s195 = scalar_lea.sflag [#allocation3], %s194
        %s196 = sand.u32 %s29, 1
        %s197 = smul.addr %s196, 8
        %s198 = scalar_lea.vmem [#allocation2], %s197
        %p199 = pneg %p42
        %p200 = pneg %p39
        %p201 = pneg %p63
        %p202 = pneg %p60
        %p203 = pneg %p84
        %p204 = pneg %p81
        %p205 = pneg %p105
        %p206 = pneg %p102
        %p207 = pneg %p131
        %p208 = pneg %p128
        %s209 = sand.u32 %s118, 1
        %s210 = scalar_lea.sflag [#allocation4], %s209
        %s211 = sand.u32 %s118, 1
        %s212 = smul.addr %s211, 8
        %s213 = scalar_lea.vmem [#allocation5], %s212
        %v214 = vld [vmem:[%s189] sm:$0xff]
        %v215 = vld [vmem:[%s1] sm:$0xf]
        %217 = vset.pattern.permute.xlu0 0
        %218 = vperm.xlu0 %217, %v215
        %v219 = vpop.permute.xlu0 %218
        %v222 = vlaneseq
        %v223 = vshrl.u32 %v222, 7
        %v224 = vsub.s32 0, %v223
        %v225 = vrot.slane %v214, %v224
        %v226 = vlaneseq
        %v227 = vshrl.u32 %v226, 7
        %v228 = vsub.s32 4, %v227
        %v229 = vrot.slane %v214, %v228
        %v232 = vlaneseq
        %v233 = vshrl.u32 %v232, 7
        %v234 = vsub.s32 0, %v233
        %v235 = vrot.slane %v225, %v234
        %v236 = vlaneseq
        %v237 = vshrl.u32 %v236, 7
        %v238 = vsub.s32 0, %v237
        %v239 = vrot.slane %v229, %v238
        %v240 = vmul.f32 %v219, %v235
        %v241 = vmul.f32 %v219, %v239
        %242 = vset.pattern.permute.xlu0 1
        %243 = vperm.xlu0 %242, %v215
        %v244 = vpop.permute.xlu0 %243
        %v246 = vlaneseq
        %v247 = vshrl.u32 %v246, 7
        %v248 = vsub.s32 1, %v247
        %v249 = vrot.slane %v214, %v248
        %v250 = vlaneseq
        %v251 = vshrl.u32 %v250, 7
        %v252 = vsub.s32 5, %v251
        %v253 = vrot.slane %v214, %v252
        %v256 = vlaneseq
        %v257 = vshrl.u32 %v256, 7
        %v258 = vsub.s32 1, %v257
        %v259 = vrot.slane %v249, %v258
        %v260 = vlaneseq
        %v261 = vshrl.u32 %v260, 7
        %v262 = vsub.s32 1, %v261
        %v263 = vrot.slane %v253, %v262
        %v264 = vmul.f32 %v244, %v259
        %v265 = vmul.f32 %v244, %v263
        %v266 = vadd.f32 %v240, %v264
        %v267 = vadd.f32 %v241, %v265
        %268 = vset.pattern.permute.xlu0 2
        %269 = vperm.xlu0 %268, %v215
        %v270 = vpop.permute.xlu0 %269
        %v272 = vlaneseq
        %v273 = vshrl.u32 %v272, 7
        %v274 = vsub.s32 2, %v273
        %v275 = vrot.slane %v214, %v274
        %v276 = vlaneseq
        %v277 = vshrl.u32 %v276, 7
        %v278 = vsub.s32 6, %v277
        %v279 = vrot.slane %v214, %v278
        %v282 = vlaneseq
        %v283 = vshrl.u32 %v282, 7
        %v284 = vsub.s32 2, %v283
        %v285 = vrot.slane %v275, %v284
        %v286 = vlaneseq
        %v287 = vshrl.u32 %v286, 7
        %v288 = vsub.s32 2, %v287
        %v289 = vrot.slane %v279, %v288
        %v290 = vmul.f32 %v270, %v285
        %v291 = vmul.f32 %v270, %v289
        %v292 = vadd.f32 %v266, %v290
        %v293 = vadd.f32 %v267, %v291
        %294 = vset.pattern.permute.xlu0 3
        %295 = vperm.xlu0 %294, %v215
        %v296 = vpop.permute.xlu0 %295
        %v298 = vlaneseq
        %v299 = vshrl.u32 %v298, 7
        %v300 = vsub.s32 3, %v299
        %v301 = vrot.slane %v214, %v300
        %v302 = vlaneseq
        %v303 = vshrl.u32 %v302, 7
        %v304 = vsub.s32 7, %v303
        %v305 = vrot.slane %v214, %v304
        %v308 = vlaneseq
        %v309 = vshrl.u32 %v308, 7
        %v310 = vsub.s32 3, %v309
        %v311 = vrot.slane %v301, %v310
        %v312 = vlaneseq
        %v313 = vshrl.u32 %v312, 7
        %v314 = vsub.s32 3, %v313
        %v315 = vrot.slane %v305, %v314
        %v316 = vmul.f32 %v296, %v311
        %v317 = vmul.f32 %v296, %v315
        %v318 = vadd.f32 %v292, %v316
        %v319 = vadd.f32 %v293, %v317
        %322 = vrot.lane.b32.xlu0 %v318, 16
        %v323 = vpop.permute.xlu0 %322
        %324 = vrot.lane.b32.xlu0 %v319, 16
        %v325 = vpop.permute.xlu0 %324
        %vm326 = vcmask 130048
        %v327 = vsel %vm326, %v323, %v325
        %v331 = vsel %vm326, 0.0, %v323
        %v332 = vsel %vm326, %v325, 0.0
        %335 = vrot.lane.b32.xlu0 %v331, 112
        %v336 = vpop.permute.xlu0 %335
        %337 = vrot.lane.b32.xlu0 %v327, 112
        %v338 = vpop.permute.xlu0 %337
        %339 = vrot.lane.b32.xlu0 %v332, 112
        %v340 = vpop.permute.xlu0 %339
        %vm341 = vcmask 916480
        %v342 = vsel %vm341, %v336, %v338
        %v343 = vsel %vm341, %v338, %v340
        %v346 = vadd.f32 %v331, %v342
        %v347 = vadd.f32 %v327, %v343
        %348 = vrot.lane.b32.xlu0 %v331, 96
        %v349 = vpop.permute.xlu0 %348
        %350 = vrot.lane.b32.xlu0 %v327, 96
        %v351 = vpop.permute.xlu0 %350
        %352 = vrot.lane.b32.xlu0 %v332, 96
        %v353 = vpop.permute.xlu0 %352
        %vm354 = vcmask 785408
        %v355 = vsel %vm354, %v349, %v351
        %v356 = vsel %vm354, %v351, %v353
        %v359 = vadd.f32 %v346, %v355
        %v360 = vadd.f32 %v347, %v356
        %363 = vrot.lane.b32.xlu0 %v359, 1
        %v364 = vpop.permute.xlu0 %363
        %365 = vrot.lane.b32.xlu0 %v360, 1
        %v366 = vpop.permute.xlu0 %365
        %vm367 = vcmask 7168
        %v368 = vsel %vm367, %v364, %v366
        %v372 = vsel %vm367, 0.0, %v364
        %v373 = vsel %vm367, %v366, 0.0
        %v374 = vlaneseq
        %v375 = vand.u32 %v374, 127
        %v376 = vadd.s32 %v375, 128
        %vm377 = vcmp.lt.s32.totalorder %v375, 0
        %v378 = vsub.s32 0, %v375
        %v379 = vsel %vm377, %v378, %v375
        %v380 = vshrl.u32 %v379, 4
        %v381 = vand.u32 %v379, 15
        %v382 = vsub.s32 0, %v381
        %v383 = vsel %vm377, %v382, %v381
        %vm384 = vcmp.lt.s32.totalorder %v376, 0
        %v385 = vsub.s32 0, %v376
        %v386 = vsel %vm384, %v385, %v376
        %v387 = vshrl.u32 %v386, 4
        %v388 = vand.u32 %v386, 15
        %v389 = vsub.s32 0, %v388
        %v390 = vsel %vm384, %v389, %v388
        %vm391 = vcmp.ne.s32.totalorder %v383, 0
        %vm392 = vcmp.ne.s32.totalorder %v390, 0
        %vm393 = vcmp.lt.s32.totalorder %v383, 0
        %vm394 = vcmp.lt.s32.totalorder %v390, 0
        %vm395 = vmand %vm393, %vm391
        %vm396 = vmand %vm394, %vm392
        %v397 = vadd.s32 %v383, 16
        %v398 = vadd.s32 %v390, 16
        %v399 = vsel %vm395, %v397, %v383
        %v400 = vsel %vm396, %v398, %v390
        %vm401 = vcmp.ge.s32.totalorder %v399, 1
        %vm402 = vcmp.ge.s32.totalorder %v400, 1
        %v403 = vsel %vm401, 1, 0
        %v404 = vsel %vm402, 1, 0
        %vm405 = vcmp.eq.s32.totalorder %v403, 1
        %vm406 = vcmp.eq.s32.totalorder %v404, 1
        %v407 = vsel %vm405, %v372, 0.0
        %v408 = vsel %vm406, %v368, 0.0
        %v409 = vadd.f32 %v407, 0.0
        %v410 = vadd.f32 %v408, 0.0
        %413 = vrot.lane.b32.xlu0 %v372, 127
        %v414 = vpop.permute.xlu0 %413
        %415 = vrot.lane.b32.xlu0 %v368, 127
        %v416 = vpop.permute.xlu0 %415
        %417 = vrot.lane.b32.xlu0 %v373, 127
        %v418 = vpop.permute.xlu0 %417
        %vm419 = vcmask 1039360
        %v420 = vsel %vm419, %v414, %v416
        %v421 = vsel %vm419, %v416, %v418
        %v424 = vadd.f32 %v409, %v420
        %v425 = vadd.f32 %v410, %v421
        %vm426 = vcmp.le.s32.totalorder %v399, 14
        %vm427 = vcmp.le.s32.totalorder %v400, 14
        %v428 = vsel %vm426, 1, 0
        %v429 = vsel %vm427, 1, 0
        %vm430 = vcmp.eq.s32.totalorder %v428, 1
        %vm431 = vcmp.eq.s32.totalorder %v429, 1
        %432 = vrot.lane.b32.xlu0 %v372, 126
        %v433 = vpop.permute.xlu0 %432
        %434 = vrot.lane.b32.xlu0 %v368, 126
        %v435 = vpop.permute.xlu0 %434
        %436 = vrot.lane.b32.xlu0 %v373, 126
        %v437 = vpop.permute.xlu0 %436
        %vm438 = vcmask 1031168
        %v439 = vsel %vm438, %v433, %v435
        %v440 = vsel %vm438, %v435, %v437
        %v443 = vsel %vm430, %v439, 0.0
        %v444 = vsel %vm431, %v440, 0.0
        %v445 = vadd.f32 %v424, %v443
        %v446 = vadd.f32 %v425, %v444
        %v447 = vld [vmem:[%s2] sm:$0xf]
        %v448 = vld [vmem:[%s3] sm:$0xf]
        %450 = vset.pattern.permute.xlu0 0
        %451 = vperm.xlu0 %450, %v447
        %v452 = vpop.permute.xlu0 %451
        %v454 = vmul.f32 %v445, %v452
        %v455 = vmul.f32 %v446, %v452
        %457 = vset.pattern.permute.xlu0 0
        %458 = vperm.xlu0 %457, %v448
        %v459 = vpop.permute.xlu0 %458
        %v461 = vadd.f32 %v454, %v459
        %v462 = vadd.f32 %v455, %v459
        %v465 = vcombine.low %v461, %v462
        %467 = vst [vmem:[%s213] sm:$0xff] %v465
        %s468 = sand.u32 %s118, 1
        %s469 = scalar_lea.sflag [#allocation4], %s468
        %s470 = sand.u32 %s118, 1
        %s471 = smul.addr %s470, 8
        %s472 = scalar_lea.vmem [#allocation5], %s471
        // Predicated region
        $region41: #{tpu_custom_call.1} parent=35 // pred_check
          %p473 = pneg %p128
        $region42: #{tpu_custom_call.1} parent=35 // pred_check_branch
          %475 = sbr.rel (%p473) target = $region44
        $region43: #{tpu_custom_call.1} parent=35 // pred_region
          %s477 = ssub.s32 128, 128
          %478 = vsyncadd %s469, %s477
          %s479 = smul.addr %s21, 2
          %s480 = smul.addr %s479, 64
          %s481 = scalar_lea.hbm %s4, %s480
          %s483 = sshll.u32 %s472, 4
          %s484 = int_to_ptr.vmem [resolvable:$true] %s483
          %486 = dma.vmem_to_hbm [thread:$0]  %s484, 128, %s481, %s469
        $region44: #{tpu_custom_call.1} parent=35 // pred_fallthru
          _
      $region36: #{tpu_custom_call.1} parent=5 // pred_fallthru
        _
      %p487 = scmp.le.s32.totalorder 2, %s16
      // Predicated region
      $region45: #{tpu_custom_call.1} parent=5 // pred_check
        %p488 = pneg %p487
      $region46: #{tpu_custom_call.1} parent=5 // pred_check_branch
        %490 = sbr.rel (%p488) target = $region48
      $region47: #{tpu_custom_call.1} parent=5 // pred_region
        %s491 = ssub.s32 %s16, 2
        // Predicated region
        $region49: #{tpu_custom_call.1} parent=47 // pred_check
          %p492 = pneg %p134
        $region50: #{tpu_custom_call.1} parent=47 // pred_check_branch
          %494 = sbr.rel (%p492) target = $region52
        $region51: #{tpu_custom_call.1} parent=47 // pred_region
          %s495 = sand.u32 %s119, 1
          %s496 = scalar_lea.sflag [#allocation4], %s495
          %s497 = sand.u32 %s119, 1
          %s498 = smul.addr %s497, 8
          %s499 = scalar_lea.vmem [#allocation5], %s498
          %500 = dma.done %s496, 128
        $region52: #{tpu_custom_call.1} parent=47 // pred_fallthru
          _
      $region48: #{tpu_custom_call.1} parent=5 // pred_fallthru
        _
    $region6: #{tpu_custom_call.1} parent=1 // loop_footer
      %s20 = sadd.s32 1, %s16
    $region7: #{tpu_custom_call.1} parent=1 // loop_footer_branch
      %15 = sbr.rel target = $region3
    $region8: #{tpu_custom_call.1} parent=1 // loop_exit
      _
    %501 = vsyncpa [#allocation3], 1
    %s502 = scalar_lea.sflag [#allocation3], 1
    %503 = vsyncpa %s502, 1
    %504 = vsyncpa [#allocation4], 1
    %s505 = scalar_lea.sflag [#allocation4], 1
    %506 = vsyncpa %s505, 1

</llo_original>
